<compile_context>
chip_gen: v6e
topology: v6e:2x2x1
jax: 0.10.0
libtpu: 0.0.40
codegen_flags: <defaults>
</compile_context>

<pallas_src>
import jax
import jax.numpy as jnp
from jax import lax
from jax.experimental import pallas as pl
from jax.experimental.pallas import tpu as pltpu


# --------------------------------------------------------------------------- #
# Kernel body
# --------------------------------------------------------------------------- #
def _mlp_kernel(x_ref, w_ref, b_ref, o_ref):
    # x_ref: (1, C, T)  -- channel-major slab of T tokens (tokens on lanes)
    # w_ref: (C, E)     -- projection weight (resident across the grid)
    # b_ref: (1, E)
    # o_ref: (1, T, E)
    x = x_ref[0]                       # (C, T)
    w = w_ref[...]                     # (C, E)
    # Contract the channel axis of both operands: (C, T) x (C, E) -> (T, E).
    # This performs flatten(2).transpose(1, 2) as part of the MXU feed instead
    # of an extra HBM pass in the wrapper.
    y = lax.dot_general(
        x, w,
        dimension_numbers=(((0,), (0,)), ((), ())),
        preferred_element_type=jnp.float32,
    )                                  # (T, E), f32 accumulation
    y = y + b_ref[...].astype(jnp.float32)
    o_ref[0] = y.astype(o_ref.dtype)


# --------------------------------------------------------------------------- #
# Generation-aware sizing
# --------------------------------------------------------------------------- #
def _tpu_generation_params():
    """Return (vmem_budget_bytes, num_tensorcores, tile_align) for this TPU."""
    kind = ""
    try:
        kind = jax.devices()[0].device_kind.lower()
    except Exception:
        pass
    if "7" in kind:                               # v7x: 64 MiB VMEM / TC, 2 TCs
        budget, cores, align = 26 << 20, 2, 256
    elif "v6" in kind or "trillium" in kind:      # v6e: 128 MiB physical VMEM
        budget, cores, align = 56 << 20, 1, 256
    elif "v5" in kind:                            # v5e/v5p: explicit limit beats
        budget, cores, align = 28 << 20, 1, 128   # the 16 MiB scoped default
    else:                                         # unknown generation: be safe
        budget, cores, align = 16 << 20, 1, 128
    try:
        # Cross-check against the physical capacity when the query exists;
        # never claim more than ~45% of physical per core.
        phys = int(pltpu.get_tpu_info().vmem_capacity_bytes)
        budget = min(budget, max(int(phys * 0.45), 8 << 20))
    except Exception:
        pass
    return int(budget), int(cores), int(align)


def _pick_hw_tile(hw, c, e, in_itemsize, out_itemsize, batch, *,
                  vmem_budget, num_cores, align, cap=2048, in_bufs=3):
    """Largest token tile (aligned multiple of 128, or the full HW extent)
    whose multi-buffered input slab + double-buffered output tile + resident
    weight + f32 (T, E) accumulator fit the generation-aware VMEM budget."""
    slack = 1 << 20                               # bias broadcast / misc
    w_bytes = 2 * c * e * in_itemsize             # resident weight (x2 conservative)
    per_tok = (in_bufs * c * in_itemsize          # buffered x slab columns
               + 2 * e * out_itemsize             # double-buffered output rows
               + e * 4)                           # f32 matmul accumulator rows
    t = (vmem_budget - w_bytes - slack) // per_tok
    t = int(min(t, cap, hw))
    if t >= hw:
        # A single full-HW block fits.  On multi-TC chips (v7x megacore) make
        # sure the (B, n_hw) grid has >= num_cores steps so no TC sits idle.
        if batch >= num_cores or hw < 2 * 128:
            return int(hw)
        t = int(pl.cdiv(hw, num_cores))
    t = max((t // align) * align, 128)
    if t >= hw:
        return int(hw)
    return int(t)


# --------------------------------------------------------------------------- #
# Wrapper
# --------------------------------------------------------------------------- #
def mlp_forward(x_nchw, weight, bias, *, hw_tile=None):
    """x_nchw: (B, C, H, W); weight: (C, E) (transposed from PyTorch's (E, C));
    bias: (E,).  Returns (B, H*W, E) == proj(x.flatten(2).transpose(1, 2))."""
    B, C, H, W = x_nchw.shape
    Cw, E = weight.shape
    assert Cw == C, (Cw, C)
    HW = H * W

    # Free view (no data movement): NCHW -> (B, C, H*W); hw index = h*W + w,
    # exactly matching torch's flatten(2) ordering.
    x_bct = x_nchw.reshape(B, C, HW)
    bias2d = bias.reshape(1, E)

    vmem_budget, num_cores, align = _tpu_generation_params()

    in_itemsize = x_nchw.dtype.itemsize
    out_itemsize = x_nchw.dtype.itemsize          # output dtype == input dtype
    if hw_tile is None:
        hw_tile = _pick_hw_tile(HW, C, E, in_itemsize, out_itemsize, B,
                                vmem_budget=vmem_budget, num_cores=num_cores,
                                align=align)
    hw_tile = int(hw_tile)
    assert hw_tile == HW or hw_tile % 128 == 0, hw_tile
    n_hw = pl.cdiv(HW, hw_tile)

    cost = pl.CostEstimate(
        flops=int(2 * B * HW * C * E),
        transcendentals=0,
        bytes_accessed=int(B * HW * (C * in_itemsize + E * out_itemsize)
                           + C * E * weight.dtype.itemsize
                           + E * bias.dtype.itemsize),
    )

    def build(deep_input_buffering):
        x_kwargs = {}
        if deep_input_buffering and hw_tile < HW:
            # When slicing the HW (lane) axis the x DMA is C strided row
            # chunks; 3-deep buffering hides the descriptor/latency cost.
            x_kwargs["pipeline_mode"] = pl.Buffered(3)
        x_spec = pl.BlockSpec((1, C, hw_tile), lambda b, j: (b, 0, j), **x_kwargs)
        return pl.pallas_call(
            _mlp_kernel,
            out_shape=jax.ShapeDtypeStruct((B, HW, E), x_nchw.dtype),
            grid_spec=pltpu.PrefetchScalarGridSpec(
                num_scalar_prefetch=0,
                grid=(B, n_hw),
                in_specs=[
                    x_spec,                                             # x slab
                    pl.BlockSpec((C, E), lambda b, j: (0, 0)),          # weight
                    pl.BlockSpec((1, E), lambda b, j: (0, 0)),          # bias
                ],
                out_specs=pl.BlockSpec((1, hw_tile, E), lambda b, j: (b, j, 0)),
            ),
            compiler_params=pltpu.CompilerParams(
                dimension_semantics=("parallel", "parallel"),
                vmem_limit_bytes=int(vmem_budget),
            ),
            cost_estimate=cost,
        )

    try:
        return build(True)(x_bct, weight, bias2d)
    except Exception:
        # Fallback if the installed Pallas rejects pipeline_mode / Buffered(3).
        return build(False)(x_bct, weight, bias2d)


# --------------------------------------------------------------------------- #
# Self-test
# --------------------------------------------------------------------------- #
if __name__ == "__main__":
    # Small shapes consistent with the module (SegFormer-style): C=64 -> E=128.
    B, C, H, W = 2, 64, 32, 32
    E = 128

    key = jax.random.PRNGKey(0)
    kx, kw, kb = jax.random.split(key, 3)

    x = jax.random.normal(kx, (B, C, H, W), dtype=jnp.float32)

    # PyTorch nn.Linear init: uniform(-1/sqrt(C), 1/sqrt(C)); weight stored (E, C).
    bound = 1.0 / (C ** 0.5)
    w_torch = jax.random.uniform(kw, (E, C), minval=-bound, maxval=bound,
                                 dtype=jnp.float32)
    b = jax.random.uniform(kb, (E,), minval=-bound, maxval=bound,
                           dtype=jnp.float32)
    w = w_torch.T                      # (C, E) so that y = x @ W^T + b

    # Pure-JAX reference of the exact PyTorch semantics.
    tokens = jnp.transpose(x, (0, 2, 3, 1)).reshape(B, H * W, C)
    ref = jnp.einsum("btc,ce->bte", tokens, w,
                     precision=jax.lax.Precision.HIGHEST) + b

    # Explicit tile (multiple HW tiles per batch element, exercises the tiled /
    # deep-buffered path) and the auto-picked tile; both must match the ref.
    for tile in (512, None):
        out = jax.block_until_ready(mlp_forward(x, w, b, hw_tile=tile))
        assert out.shape == (B, H * W, E), out.shape
        assert jnp.allclose(out, ref, atol=1e-4, rtol=1e-4), (
            float(jnp.max(jnp.abs(out - ref))))

    # bf16 streaming path (halves HBM traffic on this bandwidth-bound op;
    # f32 MXU accumulation and f32 bias add are preserved inside the kernel).
    out_bf16 = jax.block_until_ready(
        mlp_forward(x.astype(jnp.bfloat16), w.astype(jnp.bfloat16),
                    b.astype(jnp.bfloat16)))
    assert out_bf16.shape == (B, H * W, E), out_bf16.shape
    assert jnp.allclose(out_bf16.astype(jnp.float32), ref, atol=0.2, rtol=0.05), (
        float(jnp.max(jnp.abs(out_bf16.astype(jnp.float32) - ref))))

    print("KERNEL_OK")
</pallas_src>

<mosaic_0001>
module attributes {stable_mosaic.version = 11 : i64} {
  func.func @_mlp_kernel(%arg0: i32, %arg1: i32, %arg2: memref<1x64x512xf32, #tpu.memory_space<vmem>>, %arg3: memref<64x128xf32, #tpu.memory_space<vmem>>, %arg4: memref<1x128xf32, #tpu.memory_space<vmem>>, %arg5: memref<1x512x128xf32, #tpu.memory_space<vmem>>) attributes {dimension_semantics = [#tpu.dimension_semantics<parallel>, #tpu.dimension_semantics<parallel>], iteration_bounds = array<i64: 2, 2>, scalar_prefetch = 0 : i64, scratch_operands = 0 : i64, tpu.core_type = #tpu.core_type<tc>, window_params = [{transform_indices = @transform_0, window_bounds = array<i64: 1, 64, 512>}, {pipeline_mode = #tpu.pipeline_mode<synchronous>, transform_indices = @transform_1, window_bounds = array<i64: 64, 128>}, {pipeline_mode = #tpu.pipeline_mode<synchronous>, transform_indices = @transform_2, window_bounds = array<i64: 1, 128>}, {transform_indices = @transform_3, window_bounds = array<i64: 1, 512, 128>}]} {
    %c0 = arith.constant 0 : index
    %c0_0 = arith.constant 0 : index
    %c0_1 = arith.constant 0 : index
    %0 = vector.load %arg2[%c0, %c0_0, %c0_1] : memref<1x64x512xf32, #tpu.memory_space<vmem>>, vector<1x64x512xf32>
    %1 = vector.shape_cast %0 : vector<1x64x512xf32> to vector<64x512xf32>
    %c0_2 = arith.constant 0 : index
    %c0_3 = arith.constant 0 : index
    %2 = vector.load %arg3[%c0_2, %c0_3] : memref<64x128xf32, #tpu.memory_space<vmem>>, vector<64x128xf32>
    %cst = arith.constant dense<0.000000e+00> : vector<512x128xf32>
    %3 = tpu.matmul %1, %2, %cst {dimension_numbers = #tpu.dot_dimension_numbers<[0], [0], [1], [1], [0, 1, 1, 1], [], []>} : vector<64x512xf32>, vector<64x128xf32>, vector<512x128xf32> -> vector<512x128xf32>
    %c0_4 = arith.constant 0 : index
    %c0_5 = arith.constant 0 : index
    %4 = vector.load %arg4[%c0_4, %c0_5] : memref<1x128xf32, #tpu.memory_space<vmem>>, vector<1x128xf32>
    %5 = vector.broadcast %4 : vector<1x128xf32> to vector<512x128xf32>
    %6 = arith.addf %3, %5 : vector<512x128xf32>
    %c0_6 = arith.constant 0 : index
    %c0_7 = arith.constant 0 : index
    %c0_8 = arith.constant 0 : index
    %7 = vector.load %arg5[%c0_6, %c0_7, %c0_8] : memref<1x512x128xf32, #tpu.memory_space<vmem>>, vector<1x512x128xf32>
    %8 = vector.shape_cast %7 : vector<1x512x128xf32> to vector<512x128xf32>
    %9 = vector.shape_cast %6 : vector<512x128xf32> to vector<1x512x128xf32>
    tpu.vector_store %arg5[%c0_6, %c0_7, %c0_8], %9 {strides = array<i32>} : memref<1x512x128xf32, #tpu.memory_space<vmem>>, vector<1x512x128xf32>,
    return
  }
  func.func @transform_0(%arg0: i32, %arg1: i32) -> (i32, i32, i32) {
    %c0_i32 = arith.constant 0 : i32
    %c0_i32_0 = arith.constant 0 : i32
    return %arg0, %c0_i32, %arg1 : i32, i32, i32
  }
  func.func @transform_1(%arg0: i32, %arg1: i32) -> (i32, i32) {
    %c0_i32 = arith.constant 0 : i32
    %c0_i32_0 = arith.constant 0 : i32
    %c0_i32_1 = arith.constant 0 : i32
    return %c0_i32, %c0_i32_0 : i32, i32
  }
  func.func @transform_2(%arg0: i32, %arg1: i32) -> (i32, i32) {
    %c0_i32 = arith.constant 0 : i32
    %c0_i32_0 = arith.constant 0 : i32
    %c0_i32_1 = arith.constant 0 : i32
    return %c0_i32, %c0_i32_0 : i32, i32
  }
  func.func @transform_3(%arg0: i32, %arg1: i32) -> (i32, i32, i32) {
    %c0_i32 = arith.constant 0 : i32
    %c0_i32_0 = arith.constant 0 : i32
    return %arg0, %arg1, %c0_i32 : i32, i32, i32
  }
}

</mosaic_0001>

<llo_original>
// kernel: tpu_custom_call.1
$region0: #{tpu_custom_call.1}
  #allocation0 [shape = 'u32[]', space=smem, size = 0x4, offset = 0x4, fixed_abs, tag = 'smem constant byte address 0x4 - core index']
  #allocation1 [shape = 'u32[144,128]{1,0:T(1,128)}', space=vmem, size = 0x12000, scoped, tag = 'internal scratch']
  %s0 = inlined_call_operand.hbm [shape: f32[2,64,1024], index: 0, kind: input, shape index: {}]
  %s1 = inlined_call_operand.hbm [shape: f32[64,128], index: 1, kind: input, shape index: {}]
  %s2 = inlined_call_operand.vmem [shape: f32[1,128], index: 2, kind: input, shape index: {}]
  %s3 = inlined_call_operand.hbm [shape: f32[2,1024,128], index: 3, kind: output, shape index: {}]
  %s4 = sld [smem:[#allocation0]]
  $region53: #{tpu_custom_call.1} parent=0
    _
  %s6 = ssub.s32 1, %s4
  %s7 = scalar_select 0, %s6, %s4
  $region1: #{tpu_custom_call.1} parent=0
    #allocation2 [shape = 'u8[262144]{0}', space=vmem, size = 0x40000, scoped, tag = 'input window, operand 0']
    #allocation3 [shape = 's32[2]{0}', space=sflag, size = 0x8, scoped, tag = 'scoped memory for tpu_custom_call.1']
    #allocation4 [shape = 's32[2]{0}', space=sflag, size = 0x8, scoped, tag = 'scoped memory for tpu_custom_call.1']
    #allocation5 [shape = 'u8[32768]{0}', space=vmem, size = 0x8000, scoped, tag = 'input window, operand 1, single buffered']
    #allocation6 [shape = 's32[1]{0}', space=sflag, size = 0x4, scoped, tag = 'scoped memory for tpu_custom_call.1']
    #allocation7 [shape = 'u8[524288]{0}', space=vmem, size = 0x80000, scoped, tag = 'output window, operand 0']
    %8 = vsyncpa [#allocation3], 0
    %s9 = scalar_lea.sflag [#allocation3], 1
    %10 = vsyncpa %s9, 0
    %11 = vsyncpa [#allocation6], 0
    %12 = vsyncpa [#allocation4], 0
    %s13 = scalar_lea.sflag [#allocation4], 1
    %14 = vsyncpa %s13, 0
    loop: start=0, step=1, limit=6
    $region2: #{tpu_custom_call.1} parent=1 // loop_pre_header
      _
    $region3: #{tpu_custom_call.1} parent=1 // loop_header
      %s16 = sphi 0, %s20
      %p17 = scmp.ge.s32.totalorder %s16, 6
      %s23 = sphi 0, %s35
      %s24 = sphi 0, %s31
      %s25 = sphi 0, %s23
      %s26 = sphi 0, %s24
      %s27 = sphi 0, %s25
      %s28 = sphi 0, %s26
      %s40 = sphi 0, %s42
      %s43 = sphi 0, %s40
      %s44 = sphi 0, %s43
      %s60 = sphi 0, %s44
      %s64 = sphi 0, %s64
      %s66 = sphi 0, %s64
      %s67 = sphi 0, %s66
      %s81 = sphi 0, %s67
      %s85 = sphi 0, %s85
      %s87 = sphi 0, %s85
      %s88 = sphi 0, %s87
      %s102 = sphi 0, %s88
      %s110 = sphi 0, %s112
      %s113 = sphi 0, %s110
      %s114 = sphi 0, %s113
      %s130 = sphi 0, %s114
    $region4: #{tpu_custom_call.1} parent=1 // loop_header_branch
      %19 = sbr.rel (%p17) target = $region8
    $region5: #{tpu_custom_call.1} parent=1 // loop_body
      %s21 = ssub.s32 %s16, 1
      %s22 = ssub.s32 %s16, 2
      %s29 = sadd.s32 1, %s24
      %p30 = scmp.ge.s32.totalorder %s29, 2
      %s31 = scalar_select %p30, 0, %s29
      %s32 = sadd.s32 1, %s23
      %s33 = scalar_select %p30, %s32, %s23
      %p34 = scmp.ge.s32.totalorder %s33, 2
      %s35 = scalar_select %p34, 0, %s33
      %s36 = ssub.s32 %s23, %s35
      %s37 = ssub.s32 %s24, %s31
      %s38 = sor.u32 %s36, %s37
      %p39 = scmp.eq.s32.totalorder %s38, 0
      %s41 = sadd.s32 %s40, 1
      %s42 = scalar_select %p39, %s40, %s41
      %p45 = pneg %p39
      %p46 = scmp.eq.s32.totalorder %s16, 3
      %p47 = por %p45, %p46
      %p48 = scmp.ne.s32.totalorder %s40, %s43
      %p49 = scmp.eq.s32.totalorder %s16, 0
      %p50 = por %p48, %p49
      %p51 = scmp.ne.s32.totalorder %s40, %s43
      %p52 = scmp.eq.s32.totalorder %s21, 3
      %p53 = por %p51, %p52
      %p54 = scmp.ne.s32.totalorder %s43, %s44
      %p55 = scmp.eq.s32.totalorder %s21, 0
      %p56 = por %p54, %p55
      %p57 = scmp.ne.s32.totalorder %s43, %s44
      %p58 = scmp.eq.s32.totalorder %s22, 3
      %p59 = por %p57, %p58
      %p61 = scmp.ne.s32.totalorder %s44, %s60
      %p62 = scmp.eq.s32.totalorder %s22, 0
      %p63 = por %p61, %p62
      %s65 = sadd.s32 %s64, 1
      %p68 = scmp.eq.s32.totalorder %s16, 3
      %p69 = scmp.ne.s32.totalorder %s64, %s66
      %p70 = scmp.eq.s32.totalorder %s16, 0
      %p71 = por %p69, %p70
      %p72 = scmp.ne.s32.totalorder %s64, %s66
      %p73 = scmp.eq.s32.totalorder %s21, 3
      %p74 = por %p72, %p73
      %p75 = scmp.ne.s32.totalorder %s66, %s67
      %p76 = scmp.eq.s32.totalorder %s21, 0
      %p77 = por %p75, %p76
      %p78 = scmp.ne.s32.totalorder %s66, %s67
      %p79 = scmp.eq.s32.totalorder %s22, 3
      %p80 = por %p78, %p79
      %p82 = scmp.ne.s32.totalorder %s67, %s81
      %p83 = scmp.eq.s32.totalorder %s22, 0
      %p84 = por %p82, %p83
      %s86 = sadd.s32 %s85, 1
      %p89 = scmp.eq.s32.totalorder %s16, 3
      %p90 = scmp.ne.s32.totalorder %s85, %s87
      %p91 = scmp.eq.s32.totalorder %s16, 0
      %p92 = por %p90, %p91
      %p93 = scmp.ne.s32.totalorder %s85, %s87
      %p94 = scmp.eq.s32.totalorder %s21, 3
      %p95 = por %p93, %p94
      %p96 = scmp.ne.s32.totalorder %s87, %s88
      %p97 = scmp.eq.s32.totalorder %s21, 0
      %p98 = por %p96, %p97
      %p99 = scmp.ne.s32.totalorder %s87, %s88
      %p100 = scmp.eq.s32.totalorder %s22, 3
      %p101 = por %p99, %p100
      %p103 = scmp.ne.s32.totalorder %s88, %s102
      %p104 = scmp.eq.s32.totalorder %s22, 0
      %p105 = por %p103, %p104
      %s106 = ssub.s32 %s23, %s35
      %s107 = ssub.s32 %s24, %s31
      %s108 = sor.u32 %s106, %s107
      %p109 = scmp.eq.s32.totalorder %s108, 0
      %s111 = sadd.s32 %s110, 1
      %s112 = scalar_select %p109, %s110, %s111
      %p115 = pneg %p109
      %p116 = scmp.eq.s32.totalorder %s16, 3
      %p117 = por %p115, %p116
      %p118 = scmp.ne.s32.totalorder %s110, %s113
      %p119 = scmp.eq.s32.totalorder %s16, 0
      %p120 = por %p118, %p119
      %p121 = scmp.ne.s32.totalorder %s110, %s113
      %p122 = scmp.eq.s32.totalorder %s21, 3
      %p123 = por %p121, %p122
      %p124 = scmp.ne.s32.totalorder %s113, %s114
      %p125 = scmp.eq.s32.totalorder %s21, 0
      %p126 = por %p124, %p125
      %p127 = scmp.ne.s32.totalorder %s113, %s114
      %p128 = scmp.eq.s32.totalorder %s22, 3
      %p129 = por %p127, %p128
      %p131 = scmp.ne.s32.totalorder %s114, %s130
      %p132 = scmp.eq.s32.totalorder %s22, 0
      %p133 = por %p131, %p132
      %p134 = scmp.le.s32.totalorder 1, %s16
      %p135 = scmp.lt.s32.totalorder %s16, 5
      %p136 = pnand %p134, %p135
      %p137 = pneg %p136
      // Predicated region
      $region9: #{tpu_custom_call.1} parent=5 // pred_check
        _
      $region10: #{tpu_custom_call.1} parent=5 // pred_check_branch
        %139 = sbr.rel (%p136) target = $region12
      $region11: #{tpu_custom_call.1} parent=5 // pred_region
        %s140 = ssub.s32 %s16, 1
        // Predicated region
        $region13: #{tpu_custom_call.1} parent=11 // pred_check
          %p141 = pneg %p77
        $region14: #{tpu_custom_call.1} parent=11 // pred_check_branch
          %143 = sbr.rel (%p141) target = $region16
        $region15: #{tpu_custom_call.1} parent=11 // pred_region
          %s145 = ssub.s32 1024, 1024
          %146 = vsyncadd [#allocation6], %s145
          %s147 = sshll.u32 [#allocation5], 4
          %s148 = int_to_ptr.vmem [resolvable:$true] %s147
          %153 = dma.hbm_to_vmem [thread:$0]  %s1, 1024, %s148, [#allocation6], 128, 128, 8
        $region16: #{tpu_custom_call.1} parent=11 // pred_fallthru
          _
        // Predicated region
        $region17: #{tpu_custom_call.1} parent=11 // pred_check
          %p154 = pneg %p98
        $region18: #{tpu_custom_call.1} parent=11 // pred_check_branch
          %156 = sbr.rel (%p154) target = $region20
        $region19: #{tpu_custom_call.1} parent=11 // pred_region
          _
        $region20: #{tpu_custom_call.1} parent=11 // pred_fallthru
          _
      $region12: #{tpu_custom_call.1} parent=5 // pred_fallthru
        _
      %p157 = scmp.lt.s32.totalorder %s16, 4
      // Predicated region
      $region21: #{tpu_custom_call.1} parent=5 // pred_check
        %p158 = pneg %p157
      $region22: #{tpu_custom_call.1} parent=5 // pred_check_branch
        %160 = sbr.rel (%p158) target = $region24
      $region23: #{tpu_custom_call.1} parent=5 // pred_region
        // Predicated region
        $region25: #{tpu_custom_call.1} parent=23 // pred_check
          %p161 = pneg %p50
        $region26: #{tpu_custom_call.1} parent=23 // pred_check_branch
          %163 = sbr.rel (%p161) target = $region28
        $region27: #{tpu_custom_call.1} parent=23 // pred_region
          %s164 = sand.u32 %s40, 1
          %s165 = scalar_lea.sflag [#allocation3], %s164
          %s166 = sand.u32 %s40, 1
          %s167 = smul.addr %s166, 256
          %s168 = scalar_lea.vmem [#allocation2], %s167
          %s169 = smul.u32 4, %s24
          %s171 = ssub.s32 4096, 4096
          %172 = vsyncadd %s165, %s171
          %s173 = smul.addr %s23, 64
          %s174 = sadd.s32 %s169, %s173
          %s175 = smul.addr %s174, 128
          %s176 = scalar_lea.hbm %s0, %s175
          %s177 = sshll.u32 %s168, 4
          %s178 = int_to_ptr.vmem [resolvable:$true] %s177
          %183 = dma.hbm_to_vmem [thread:$0]  %s176, 4096, %s178, %s165, 1024, 512, 32
        $region28: #{tpu_custom_call.1} parent=23 // pred_fallthru
          _
      $region24: #{tpu_custom_call.1} parent=5 // pred_fallthru
        _
      %p184 = scmp.le.s32.totalorder 1, %s16
      %p185 = scmp.lt.s32.totalorder %s16, 5
      %p186 = pnand %p184, %p185
      %p187 = pneg %p186
      // Predicated region
      $region29: #{tpu_custom_call.1} parent=5 // pred_check
        _
      $region30: #{tpu_custom_call.1} parent=5 // pred_check_branch
        %189 = sbr.rel (%p186) target = $region32
      $region31: #{tpu_custom_call.1} parent=5 // pred_region
        %s190 = ssub.s32 %s16, 1
        %s191 = sand.u32 %s43, 1
        %s192 = scalar_lea.sflag [#allocation3], %s191
        %s193 = sand.u32 %s43, 1
        %s194 = smul.addr %s193, 256
        %s195 = scalar_lea.vmem [#allocation2], %s194
        // Predicated region
        $region33: #{tpu_custom_call.1} parent=31 // pred_check
          %p196 = pneg %p56
        $region34: #{tpu_custom_call.1} parent=31 // pred_check_branch
          %198 = sbr.rel (%p196) target = $region36
        $region35: #{tpu_custom_call.1} parent=31 // pred_region
          %199 = dma.done %s192, 4096
        $region36: #{tpu_custom_call.1} parent=31 // pred_fallthru
          _
        // Predicated region
        $region37: #{tpu_custom_call.1} parent=31 // pred_check
          %p200 = pneg %p77
        $region38: #{tpu_custom_call.1} parent=31 // pred_check_branch
          %202 = sbr.rel (%p200) target = $region40
        $region39: #{tpu_custom_call.1} parent=31 // pred_region
          %203 = dma.done [#allocation6], 1024
        $region40: #{tpu_custom_call.1} parent=31 // pred_fallthru
          _
        %s204 = sand.u32 %s43, 1
        %s205 = scalar_lea.sflag [#allocation3], %s204
        %s206 = sand.u32 %s43, 1
        %s207 = smul.addr %s206, 256
        %s208 = scalar_lea.vmem [#allocation2], %s207
        %p209 = pneg %p56
        %p210 = pneg %p53
        %p211 = pneg %p77
        %p212 = pneg %p74
        %p213 = pneg %p98
        %p214 = pneg %p95
        %p215 = pneg %p126
        %p216 = pneg %p123
        %s217 = sand.u32 %s113, 1
        %s218 = scalar_lea.sflag [#allocation4], %s217
        %s219 = sand.u32 %s113, 1
        %s220 = smul.addr %s219, 512
        %s221 = scalar_lea.vmem [#allocation7], %s220
        %s222 = smul.u32 4, %s26
        %s223 = smul.u32 64, %s26
        %v224 = vld [vmem:[%s195] sm:$0xff]
        %v225 = vld [vmem:[%s195 + $0x8] sm:$0xff]
        %v226 = vld [vmem:[%s195 + $0x10] sm:$0xff]
        %v227 = vld [vmem:[%s195 + $0x18] sm:$0xff]
        %v228 = vld [vmem:[%s195 + $0x20] sm:$0xff]
        %v229 = vld [vmem:[%s195 + $0x28] sm:$0xff]
        %v230 = vld [vmem:[%s195 + $0x30] sm:$0xff]
        %v231 = vld [vmem:[%s195 + $0x38] sm:$0xff]
        %v232 = vld [vmem:[%s195 + $0x40] sm:$0xff]
        %v233 = vld [vmem:[%s195 + $0x48] sm:$0xff]
        %v234 = vld [vmem:[%s195 + $0x50] sm:$0xff]
        %v235 = vld [vmem:[%s195 + $0x58] sm:$0xff]
        %v236 = vld [vmem:[%s195 + $0x60] sm:$0xff]
        %v237 = vld [vmem:[%s195 + $0x68] sm:$0xff]
        %v238 = vld [vmem:[%s195 + $0x70] sm:$0xff]
        %v239 = vld [vmem:[%s195 + $0x78] sm:$0xff]
        %v240 = vld [vmem:[%s195 + $0x80] sm:$0xff]
        %v241 = vld [vmem:[%s195 + $0x88] sm:$0xff]
        %v242 = vld [vmem:[%s195 + $0x90] sm:$0xff]
        %v243 = vld [vmem:[%s195 + $0x98] sm:$0xff]
        %v244 = vld [vmem:[%s195 + $0xa0] sm:$0xff]
        %v245 = vld [vmem:[%s195 + $0xa8] sm:$0xff]
        %v246 = vld [vmem:[%s195 + $0xb0] sm:$0xff]
        %v247 = vld [vmem:[%s195 + $0xb8] sm:$0xff]
        %v248 = vld [vmem:[%s195 + $0xc0] sm:$0xff]
        %v249 = vld [vmem:[%s195 + $0xc8] sm:$0xff]
        %v250 = vld [vmem:[%s195 + $0xd0] sm:$0xff]
        %v251 = vld [vmem:[%s195 + $0xd8] sm:$0xff]
        %v252 = vld [vmem:[%s195 + $0xe0] sm:$0xff]
        %v253 = vld [vmem:[%s195 + $0xe8] sm:$0xff]
        %v254 = vld [vmem:[%s195 + $0xf0] sm:$0xff]
        %v255 = vld [vmem:[%s195 + $0xf8] sm:$0xff]
        %v256 = vld [vmem:[#allocation5] sm:$0xff]
        %v257 = vld [vmem:[#allocation5 + $0x8] sm:$0xff]
        %v258 = vld [vmem:[#allocation5 + $0x10] sm:$0xff]
        %v259 = vld [vmem:[#allocation5 + $0x18] sm:$0xff]
        %v260 = vld [vmem:[#allocation5 + $0x20] sm:$0xff]
        %v261 = vld [vmem:[#allocation5 + $0x28] sm:$0xff]
        %v262 = vld [vmem:[#allocation5 + $0x30] sm:$0xff]
        %v263 = vld [vmem:[#allocation5 + $0x38] sm:$0xff]
        %v264 = vld [vmem:[%s2] sm:$0x1]
        %v266 = vlaneseq
        %v267 = vshrl.u32 %v266, 7
        %v268 = vsub.s32 0, %v267
        %v269 = vrot.slane %v264, %v268
        %271 = vxpose.xlu0.b32.start [1/16] %v224, 128
        %272 = vxpose.xlu0.b32.cont [2/16] %v228, 128
        %273 = vxpose.xlu0.b32.cont [3/16] %v232, 128
        %274 = vxpose.xlu0.b32.cont [4/16] %v236, 128
        %275 = vxpose.xlu0.b32.cont [5/16] %v240, 128
        %276 = vxpose.xlu0.b32.cont [6/16] %v244, 128
        %277 = vxpose.xlu0.b32.cont [7/16] %v248, 128
        %278 = vxpose.xlu0.b32.cont [8/16] %v252, 128
        %279 = vxpose.xlu0.b32.cont [9/16] 0.0, 128
        %280 = vxpose.xlu0.b32.cont [10/16] 0.0, 128
        %281 = vxpose.xlu0.b32.cont [11/16] 0.0, 128
        %282 = vxpose.xlu0.b32.cont [12/16] 0.0, 128
        %283 = vxpose.xlu0.b32.cont [13/16] 0.0, 128
        %284 = vxpose.xlu0.b32.cont [14/16] 0.0, 128
        %285 = vxpose.xlu0.b32.cont [15/16] 0.0, 128
        %286 = vxpose.xlu0.b32.end [16/16] 0.0, 128
        %v287 = vpop.trf.xlu0
        %v288 = vpop.trf.xlu0
        %v289 = vpop.trf.xlu0
        %v290 = vpop.trf.xlu0
        %v291 = vpop.trf.xlu0
        %v292 = vpop.trf.xlu0
        %v293 = vpop.trf.xlu0
        %v294 = vpop.trf.xlu0
        %v295 = vpop.trf.xlu0
        %v296 = vpop.trf.xlu0
        %v297 = vpop.trf.xlu0
        %v298 = vpop.trf.xlu0
        %v299 = vpop.trf.xlu0
        %v300 = vpop.trf.xlu0
        %v301 = vpop.trf.xlu0
        %v302 = vpop.trf.xlu0
        %303 = vxpose.xlu0.b32.start [1/16] %v225, 128
        %304 = vxpose.xlu0.b32.cont [2/16] %v229, 128
        %305 = vxpose.xlu0.b32.cont [3/16] %v233, 128
        %306 = vxpose.xlu0.b32.cont [4/16] %v237, 128
        %307 = vxpose.xlu0.b32.cont [5/16] %v241, 128
        %308 = vxpose.xlu0.b32.cont [6/16] %v245, 128
        %309 = vxpose.xlu0.b32.cont [7/16] %v249, 128
        %310 = vxpose.xlu0.b32.cont [8/16] %v253, 128
        %311 = vxpose.xlu0.b32.cont [9/16] 0.0, 128
        %312 = vxpose.xlu0.b32.cont [10/16] 0.0, 128
        %313 = vxpose.xlu0.b32.cont [11/16] 0.0, 128
        %314 = vxpose.xlu0.b32.cont [12/16] 0.0, 128
        %315 = vxpose.xlu0.b32.cont [13/16] 0.0, 128
        %316 = vxpose.xlu0.b32.cont [14/16] 0.0, 128
        %317 = vxpose.xlu0.b32.cont [15/16] 0.0, 128
        %318 = vxpose.xlu0.b32.end [16/16] 0.0, 128
        %v319 = vpop.trf.xlu0
        %v320 = vpop.trf.xlu0
        %v321 = vpop.trf.xlu0
        %v322 = vpop.trf.xlu0
        %v323 = vpop.trf.xlu0
        %v324 = vpop.trf.xlu0
        %v325 = vpop.trf.xlu0
        %v326 = vpop.trf.xlu0
        %v327 = vpop.trf.xlu0
        %v328 = vpop.trf.xlu0
        %v329 = vpop.trf.xlu0
        %v330 = vpop.trf.xlu0
        %v331 = vpop.trf.xlu0
        %v332 = vpop.trf.xlu0
        %v333 = vpop.trf.xlu0
        %v334 = vpop.trf.xlu0
        %335 = vxpose.xlu0.b32.start [1/16] %v226, 128
        %336 = vxpose.xlu0.b32.cont [2/16] %v230, 128
        %337 = vxpose.xlu0.b32.cont [3/16] %v234, 128
        %338 = vxpose.xlu0.b32.cont [4/16] %v238, 128
        %339 = vxpose.xlu0.b32.cont [5/16] %v242, 128
        %340 = vxpose.xlu0.b32.cont [6/16] %v246, 128
        %341 = vxpose.xlu0.b32.cont [7/16] %v250, 128
        %342 = vxpose.xlu0.b32.cont [8/16] %v254, 128
        %343 = vxpose.xlu0.b32.cont [9/16] 0.0, 128
        %344 = vxpose.xlu0.b32.cont [10/16] 0.0, 128
        %345 = vxpose.xlu0.b32.cont [11/16] 0.0, 128
        %346 = vxpose.xlu0.b32.cont [12/16] 0.0, 128
        %347 = vxpose.xlu0.b32.cont [13/16] 0.0, 128
        %348 = vxpose.xlu0.b32.cont [14/16] 0.0, 128
        %349 = vxpose.xlu0.b32.cont [15/16] 0.0, 128
        %350 = vxpose.xlu0.b32.end [16/16] 0.0, 128
        %v351 = vpop.trf.xlu0
        %v352 = vpop.trf.xlu0
        %v353 = vpop.trf.xlu0
        %v354 = vpop.trf.xlu0
        %v355 = vpop.trf.xlu0
        %v356 = vpop.trf.xlu0
        %v357 = vpop.trf.xlu0
        %v358 = vpop.trf.xlu0
        %v359 = vpop.trf.xlu0
        %v360 = vpop.trf.xlu0
        %v361 = vpop.trf.xlu0
        %v362 = vpop.trf.xlu0
        %v363 = vpop.trf.xlu0
        %v364 = vpop.trf.xlu0
        %v365 = vpop.trf.xlu0
        %v366 = vpop.trf.xlu0
        %367 = vxpose.xlu0.b32.start [1/16] %v227, 128
        %368 = vxpose.xlu0.b32.cont [2/16] %v231, 128
        %369 = vxpose.xlu0.b32.cont [3/16] %v235, 128
        %370 = vxpose.xlu0.b32.cont [4/16] %v239, 128
        %371 = vxpose.xlu0.b32.cont [5/16] %v243, 128
        %372 = vxpose.xlu0.b32.cont [6/16] %v247, 128
        %373 = vxpose.xlu0.b32.cont [7/16] %v251, 128
        %374 = vxpose.xlu0.b32.cont [8/16] %v255, 128
        %375 = vxpose.xlu0.b32.cont [9/16] 0.0, 128
        %376 = vxpose.xlu0.b32.cont [10/16] 0.0, 128
        %377 = vxpose.xlu0.b32.cont [11/16] 0.0, 128
        %378 = vxpose.xlu0.b32.cont [12/16] 0.0, 128
        %379 = vxpose.xlu0.b32.cont [13/16] 0.0, 128
        %380 = vxpose.xlu0.b32.cont [14/16] 0.0, 128
        %381 = vxpose.xlu0.b32.cont [15/16] 0.0, 128
        %382 = vxpose.xlu0.b32.end [16/16] 0.0, 128
        %v383 = vpop.trf.xlu0
        %v384 = vpop.trf.xlu0
        %v385 = vpop.trf.xlu0
        %v386 = vpop.trf.xlu0
        %v387 = vpop.trf.xlu0
        %v388 = vpop.trf.xlu0
        %v389 = vpop.trf.xlu0
        %v390 = vpop.trf.xlu0
        %v391 = vpop.trf.xlu0
        %v392 = vpop.trf.xlu0
        %v393 = vpop.trf.xlu0
        %v394 = vpop.trf.xlu0
        %v395 = vpop.trf.xlu0
        %v396 = vpop.trf.xlu0
        %v397 = vpop.trf.xlu0
        %v398 = vpop.trf.xlu0
        %vm399 = vcmask 523264
        %v401 = vsel %vm399, %v287, 0
        %v404 = vsel %vm399, %v288, 0
        %v407 = vsel %vm399, %v289, 0
        %v410 = vsel %vm399, %v290, 0
        %v413 = vsel %vm399, %v291, 0
        %v416 = vsel %vm399, %v292, 0
        %v419 = vsel %vm399, %v293, 0
        %v422 = vsel %vm399, %v294, 0
        %v425 = vsel %vm399, %v295, 0
        %v428 = vsel %vm399, %v296, 0
        %v431 = vsel %vm399, %v297, 0
        %v434 = vsel %vm399, %v298, 0
        %v437 = vsel %vm399, %v299, 0
        %v440 = vsel %vm399, %v300, 0
        %v443 = vsel %vm399, %v301, 0
        %v446 = vsel %vm399, %v302, 0
        %v449 = vsel %vm399, %v319, 0
        %v452 = vsel %vm399, %v320, 0
        %v455 = vsel %vm399, %v321, 0
        %v458 = vsel %vm399, %v322, 0
        %v461 = vsel %vm399, %v323, 0
        %v464 = vsel %vm399, %v324, 0
        %v467 = vsel %vm399, %v325, 0
        %v470 = vsel %vm399, %v326, 0
        %v473 = vsel %vm399, %v327, 0
        %v476 = vsel %vm399, %v328, 0
        %v479 = vsel %vm399, %v329, 0
        %v482 = vsel %vm399, %v330, 0
        %v485 = vsel %vm399, %v331, 0
        %v488 = vsel %vm399, %v332, 0
        %v491 = vsel %vm399, %v333, 0
        %v494 = vsel %vm399, %v334, 0
        %v497 = vsel %vm399, %v351, 0
        %v500 = vsel %vm399, %v352, 0
        %v503 = vsel %vm399, %v353, 0
        %v506 = vsel %vm399, %v354, 0
        %v509 = vsel %vm399, %v355, 0
        %v512 = vsel %vm399, %v356, 0
        %v515 = vsel %vm399, %v357, 0
        %v518 = vsel %vm399, %v358, 0
        %v521 = vsel %vm399, %v359, 0
        %v524 = vsel %vm399, %v360, 0
        %v527 = vsel %vm399, %v361, 0
        %v530 = vsel %vm399, %v362, 0
        %v533 = vsel %vm399, %v363, 0
        %v536 = vsel %vm399, %v364, 0
        %v539 = vsel %vm399, %v365, 0
        %v542 = vsel %vm399, %v366, 0
        %v545 = vsel %vm399, %v383, 0
        %v548 = vsel %vm399, %v384, 0
        %v551 = vsel %vm399, %v385, 0
        %v554 = vsel %vm399, %v386, 0
        %v557 = vsel %vm399, %v387, 0
        %v560 = vsel %vm399, %v388, 0
        %v563 = vsel %vm399, %v389, 0
        %v566 = vsel %vm399, %v390, 0
        %v569 = vsel %vm399, %v391, 0
        %v572 = vsel %vm399, %v392, 0
        %v575 = vsel %vm399, %v393, 0
        %v578 = vsel %vm399, %v394, 0
        %v581 = vsel %vm399, %v395, 0
        %v584 = vsel %vm399, %v396, 0
        %v587 = vsel %vm399, %v397, 0
        %v590 = vsel %vm399, %v398, 0
        %592 = vmatprep.subr.mxu0 0.0
        %593 = vmatpush1.msra.mxu0 0.0
        %594 = vmatprep.subr.mxu0 0.0
        %595 = vmatpush1.msra.mxu0 0.0
        %596 = vmatprep.subr.mxu0 0.0
        %597 = vmatpush1.msra.mxu0 0.0
        %598 = vmatprep.subr.mxu0 0.0
        %599 = vmatpush1.msra.mxu0 0.0
        %600 = vmatprep.subr.mxu0 0.0
        %601 = vmatpush1.msra.mxu0 0.0
        %602 = vmatprep.subr.mxu0 0.0
        %603 = vmatpush1.msra.mxu0 0.0
        %604 = vmatprep.subr.mxu0 0.0
        %605 = vmatpush1.msra.mxu0 0.0
        %606 = vmatprep.subr.mxu0 0.0
        %607 = vmatpush1.msra.mxu0 0.0
        %608 = vmatprep.subr.mxu0 0.0
        %609 = vmatpush1.msra.mxu0 %v263
        %610 = vmatprep.subr.mxu0 0.0
        %611 = vmatpush1.msra.mxu0 %v262
        %612 = vmatprep.subr.mxu0 0.0
        %613 = vmatpush1.msra.mxu0 %v261
        %614 = vmatprep.subr.mxu0 0.0
        %615 = vmatpush1.msra.mxu0 %v260
        %616 = vmatprep.subr.mxu0 0.0
        %617 = vmatpush1.msra.mxu0 %v259
        %618 = vmatprep.subr.mxu0 0.0
        %619 = vmatpush1.msra.mxu0 %v258
        %620 = vmatprep.subr.mxu0 0.0
        %621 = vmatpush1.msra.mxu0 %v257
        %622 = vmatprep.subr.mxu0 0.0
        %623 = vmatpush1.msra.mxu0 %v256
        %624 = vmatprep.subr.mxu0 0.0
        %625 = vmatpush2.msra.mxu0 0.0
        %626 = vmatprep.subr.mxu0 0.0
        %627 = vmatpush2.msra.mxu0 0.0
        %628 = vmatprep.subr.mxu0 0.0
        %629 = vmatpush2.msra.mxu0 0.0
        %630 = vmatprep.subr.mxu0 0.0
        %631 = vmatpush2.msra.mxu0 0.0
        %632 = vmatprep.subr.mxu0 0.0
        %633 = vmatpush2.msra.mxu0 0.0
        %634 = vmatprep.subr.mxu0 0.0
        %635 = vmatpush2.msra.mxu0 0.0
        %636 = vmatprep.subr.mxu0 0.0
        %637 = vmatpush2.msra.mxu0 0.0
        %638 = vmatprep.subr.mxu0 0.0
        %639 = vmatpush2.msra.mxu0 0.0
        %640 = vmatprep.subr.mxu0 0.0
        %641 = vmatpush2.msra.mxu0 0.0
        %642 = vmatprep.subr.mxu0 0.0
        %643 = vmatpush2.msra.mxu0 0.0
        %644 = vmatprep.subr.mxu0 0.0
        %645 = vmatpush2.msra.mxu0 0.0
        %646 = vmatprep.subr.mxu0 0.0
        %647 = vmatpush2.msra.mxu0 0.0
        %648 = vmatprep.subr.mxu0 0.0
        %649 = vmatpush2.msra.mxu0 0.0
        %650 = vmatprep.subr.mxu0 0.0
        %651 = vmatpush2.msra.mxu0 0.0
        %652 = vmatprep.subr.mxu0 0.0
        %653 = vmatpush2.msra.mxu0 0.0
        %654 = vmatprep.subr.mxu0 0.0
        %655 = vmatpush2.msra.mxu0 0.0
        %656 = vmatprep.mubr.f32.mxu0 0.0
        %657 = vmatmul.mubr.f32.gmra.mxu0 %v401
        %v658 = vpop.f32.mrf.mxu0
        %v659 = vadd.f32 %v269, %v658
        %v660 = vpop.f32.mrf.mxu0
        %661 = vmatprep.mubr.f32.mxu0 0.0
        %662 = vmatmul.mubr.f32.gmra.mxu0 %v404
        %v663 = vpop.f32.mrf.mxu0
        %v664 = vadd.f32 %v269, %v663
        %v665 = vpop.f32.mrf.mxu0
        %666 = vmatprep.mubr.f32.mxu0 0.0
        %667 = vmatmul.mubr.f32.gmra.mxu0 %v407
        %v668 = vpop.f32.mrf.mxu0
        %v669 = vadd.f32 %v269, %v668
        %v670 = vpop.f32.mrf.mxu0
        %671 = vmatprep.mubr.f32.mxu0 0.0
        %672 = vmatmul.mubr.f32.gmra.mxu0 %v410
        %v673 = vpop.f32.mrf.mxu0
        %v674 = vadd.f32 %v269, %v673
        %v675 = vpop.f32.mrf.mxu0
        %676 = vmatprep.mubr.f32.mxu0 0.0
        %677 = vmatmul.mubr.f32.gmra.mxu0 %v413
        %v678 = vpop.f32.mrf.mxu0
        %v679 = vadd.f32 %v269, %v678
        %v680 = vpop.f32.mrf.mxu0
        %681 = vmatprep.mubr.f32.mxu0 0.0
        %682 = vmatmul.mubr.f32.gmra.mxu0 %v416
        %v683 = vpop.f32.mrf.mxu0
        %v684 = vadd.f32 %v269, %v683
        %v685 = vpop.f32.mrf.mxu0
        %686 = vmatprep.mubr.f32.mxu0 0.0
        %687 = vmatmul.mubr.f32.gmra.mxu0 %v419
        %v688 = vpop.f32.mrf.mxu0
        %v689 = vadd.f32 %v269, %v688
        %v690 = vpop.f32.mrf.mxu0
        %691 = vmatprep.mubr.f32.mxu0 0.0
        %692 = vmatmul.mubr.f32.gmra.mxu0 %v422
        %v693 = vpop.f32.mrf.mxu0
        %v694 = vadd.f32 %v269, %v693
        %v695 = vpop.f32.mrf.mxu0
        %696 = vmatprep.mubr.f32.mxu0 0.0
        %697 = vmatmul.mubr.f32.gmra.mxu0 %v425
        %v698 = vpop.f32.mrf.mxu0
        %v699 = vadd.f32 %v269, %v698
        %v700 = vpop.f32.mrf.mxu0
        %701 = vmatprep.mubr.f32.mxu0 0.0
        %702 = vmatmul.mubr.f32.gmra.mxu0 %v428
        %v703 = vpop.f32.mrf.mxu0
        %v704 = vadd.f32 %v269, %v703
        %v705 = vpop.f32.mrf.mxu0
        %706 = vmatprep.mubr.f32.mxu0 0.0
        %707 = vmatmul.mubr.f32.gmra.mxu0 %v431
        %v708 = vpop.f32.mrf.mxu0
        %v709 = vadd.f32 %v269, %v708
        %v710 = vpop.f32.mrf.mxu0
        %711 = vmatprep.mubr.f32.mxu0 0.0
        %712 = vmatmul.mubr.f32.gmra.mxu0 %v434
        %v713 = vpop.f32.mrf.mxu0
        %v714 = vadd.f32 %v269, %v713
        %v715 = vpop.f32.mrf.mxu0
        %716 = vmatprep.mubr.f32.mxu0 0.0
        %717 = vmatmul.mubr.f32.gmra.mxu0 %v437
        %v718 = vpop.f32.mrf.mxu0
        %v719 = vadd.f32 %v269, %v718
        %v720 = vpop.f32.mrf.mxu0
        %721 = vmatprep.mubr.f32.mxu0 0.0
        %722 = vmatmul.mubr.f32.gmra.mxu0 %v440
        %v723 = vpop.f32.mrf.mxu0
        %v724 = vadd.f32 %v269, %v723
        %v725 = vpop.f32.mrf.mxu0
        %726 = vmatprep.mubr.f32.mxu0 0.0
        %727 = vmatmul.mubr.f32.gmra.mxu0 %v443
        %v728 = vpop.f32.mrf.mxu0
        %v729 = vadd.f32 %v269, %v728
        %v730 = vpop.f32.mrf.mxu0
        %731 = vmatprep.mubr.f32.mxu0 0.0
        %732 = vmatmul.mubr.f32.gmra.mxu0 %v446
        %v733 = vpop.f32.mrf.mxu0
        %v734 = vadd.f32 %v269, %v733
        %v735 = vpop.f32.mrf.mxu0
        %736 = vmatprep.mubr.f32.mxu0 0.0
        %737 = vmatmul.mubr.f32.gmra.mxu0 %v449
        %v738 = vpop.f32.mrf.mxu0
        %v739 = vadd.f32 %v269, %v738
        %v740 = vpop.f32.mrf.mxu0
        %741 = vmatprep.mubr.f32.mxu0 0.0
        %742 = vmatmul.mubr.f32.gmra.mxu0 %v452
        %v743 = vpop.f32.mrf.mxu0
        %v744 = vadd.f32 %v269, %v743
        %v745 = vpop.f32.mrf.mxu0
        %746 = vmatprep.mubr.f32.mxu0 0.0
        %747 = vmatmul.mubr.f32.gmra.mxu0 %v455
        %v748 = vpop.f32.mrf.mxu0
        %v749 = vadd.f32 %v269, %v748
        %v750 = vpop.f32.mrf.mxu0
        %751 = vmatprep.mubr.f32.mxu0 0.0
        %752 = vmatmul.mubr.f32.gmra.mxu0 %v458
        %v753 = vpop.f32.mrf.mxu0
        %v754 = vadd.f32 %v269, %v753
        %v755 = vpop.f32.mrf.mxu0
        %756 = vmatprep.mubr.f32.mxu0 0.0
        %757 = vmatmul.mubr.f32.gmra.mxu0 %v461
        %v758 = vpop.f32.mrf.mxu0
        %v759 = vadd.f32 %v269, %v758
        %v760 = vpop.f32.mrf.mxu0
        %761 = vmatprep.mubr.f32.mxu0 0.0
        %762 = vmatmul.mubr.f32.gmra.mxu0 %v464
        %v763 = vpop.f32.mrf.mxu0
        %v764 = vadd.f32 %v269, %v763
        %v765 = vpop.f32.mrf.mxu0
        %766 = vmatprep.mubr.f32.mxu0 0.0
        %767 = vmatmul.mubr.f32.gmra.mxu0 %v467
        %v768 = vpop.f32.mrf.mxu0
        %v769 = vadd.f32 %v269, %v768
        %v770 = vpop.f32.mrf.mxu0
        %771 = vmatprep.mubr.f32.mxu0 0.0
        %772 = vmatmul.mubr.f32.gmra.mxu0 %v470
        %v773 = vpop.f32.mrf.mxu0
        %v774 = vadd.f32 %v269, %v773
        %v775 = vpop.f32.mrf.mxu0
        %776 = vmatprep.mubr.f32.mxu0 0.0
        %777 = vmatmul.mubr.f32.gmra.mxu0 %v473
        %v778 = vpop.f32.mrf.mxu0
        %v779 = vadd.f32 %v269, %v778
        %v780 = vpop.f32.mrf.mxu0
        %781 = vmatprep.mubr.f32.mxu0 0.0
        %782 = vmatmul.mubr.f32.gmra.mxu0 %v476
        %v783 = vpop.f32.mrf.mxu0
        %v784 = vadd.f32 %v269, %v783
        %v785 = vpop.f32.mrf.mxu0
        %786 = vmatprep.mubr.f32.mxu0 0.0
        %787 = vmatmul.mubr.f32.gmra.mxu0 %v479
        %v788 = vpop.f32.mrf.mxu0
        %v789 = vadd.f32 %v269, %v788
        %v790 = vpop.f32.mrf.mxu0
        %791 = vmatprep.mubr.f32.mxu0 0.0
        %792 = vmatmul.mubr.f32.gmra.mxu0 %v482
        %v793 = vpop.f32.mrf.mxu0
        %v794 = vadd.f32 %v269, %v793
        %v795 = vpop.f32.mrf.mxu0
        %796 = vmatprep.mubr.f32.mxu0 0.0
        %797 = vmatmul.mubr.f32.gmra.mxu0 %v485
        %v798 = vpop.f32.mrf.mxu0
        %v799 = vadd.f32 %v269, %v798
        %v800 = vpop.f32.mrf.mxu0
        %801 = vmatprep.mubr.f32.mxu0 0.0
        %802 = vmatmul.mubr.f32.gmra.mxu0 %v488
        %v803 = vpop.f32.mrf.mxu0
        %v804 = vadd.f32 %v269, %v803
        %v805 = vpop.f32.mrf.mxu0
        %806 = vmatprep.mubr.f32.mxu0 0.0
        %807 = vmatmul.mubr.f32.gmra.mxu0 %v491
        %v808 = vpop.f32.mrf.mxu0
        %v809 = vadd.f32 %v269, %v808
        %v810 = vpop.f32.mrf.mxu0
        %811 = vmatprep.mubr.f32.mxu0 0.0
        %812 = vmatmul.mubr.f32.gmra.mxu0 %v494
        %v813 = vpop.f32.mrf.mxu0
        %v814 = vadd.f32 %v269, %v813
        %v815 = vpop.f32.mrf.mxu0
        %816 = vmatprep.mubr.f32.mxu0 0.0
        %817 = vmatmul.mubr.f32.gmra.mxu0 %v497
        %v818 = vpop.f32.mrf.mxu0
        %v819 = vadd.f32 %v269, %v818
        %v820 = vpop.f32.mrf.mxu0
        %821 = vmatprep.mubr.f32.mxu0 0.0
        %822 = vmatmul.mubr.f32.gmra.mxu0 %v500
        %v823 = vpop.f32.mrf.mxu0
        %v824 = vadd.f32 %v269, %v823
        %v825 = vpop.f32.mrf.mxu0
        %826 = vmatprep.mubr.f32.mxu0 0.0
        %827 = vmatmul.mubr.f32.gmra.mxu0 %v503
        %v828 = vpop.f32.mrf.mxu0
        %v829 = vadd.f32 %v269, %v828
        %v830 = vpop.f32.mrf.mxu0
        %831 = vmatprep.mubr.f32.mxu0 0.0
        %832 = vmatmul.mubr.f32.gmra.mxu0 %v506
        %v833 = vpop.f32.mrf.mxu0
        %v834 = vadd.f32 %v269, %v833
        %v835 = vpop.f32.mrf.mxu0
        %836 = vmatprep.mubr.f32.mxu0 0.0
        %837 = vmatmul.mubr.f32.gmra.mxu0 %v509
        %v838 = vpop.f32.mrf.mxu0
        %v839 = vadd.f32 %v269, %v838
        %v840 = vpop.f32.mrf.mxu0
        %841 = vmatprep.mubr.f32.mxu0 0.0
        %842 = vmatmul.mubr.f32.gmra.mxu0 %v512
        %v843 = vpop.f32.mrf.mxu0
        %v844 = vadd.f32 %v269, %v843
        %v845 = vpop.f32.mrf.mxu0
        %846 = vmatprep.mubr.f32.mxu0 0.0
        %847 = vmatmul.mubr.f32.gmra.mxu0 %v515
        %v848 = vpop.f32.mrf.mxu0
        %v849 = vadd.f32 %v269, %v848
        %v850 = vpop.f32.mrf.mxu0
        %851 = vmatprep.mubr.f32.mxu0 0.0
        %852 = vmatmul.mubr.f32.gmra.mxu0 %v518
        %v853 = vpop.f32.mrf.mxu0
        %v854 = vadd.f32 %v269, %v853
        %v855 = vpop.f32.mrf.mxu0
        %856 = vmatprep.mubr.f32.mxu0 0.0
        %857 = vmatmul.mubr.f32.gmra.mxu0 %v521
        %v858 = vpop.f32.mrf.mxu0
        %v859 = vadd.f32 %v269, %v858
        %v860 = vpop.f32.mrf.mxu0
        %861 = vmatprep.mubr.f32.mxu0 0.0
        %862 = vmatmul.mubr.f32.gmra.mxu0 %v524
        %v863 = vpop.f32.mrf.mxu0
        %v864 = vadd.f32 %v269, %v863
        %v865 = vpop.f32.mrf.mxu0
        %866 = vmatprep.mubr.f32.mxu0 0.0
        %867 = vmatmul.mubr.f32.gmra.mxu0 %v527
        %v868 = vpop.f32.mrf.mxu0
        %v869 = vadd.f32 %v269, %v868
        %v870 = vpop.f32.mrf.mxu0
        %871 = vmatprep.mubr.f32.mxu0 0.0
        %872 = vmatmul.mubr.f32.gmra.mxu0 %v530
        %v873 = vpop.f32.mrf.mxu0
        %v874 = vadd.f32 %v269, %v873
        %v875 = vpop.f32.mrf.mxu0
        %876 = vmatprep.mubr.f32.mxu0 0.0
        %877 = vmatmul.mubr.f32.gmra.mxu0 %v533
        %v878 = vpop.f32.mrf.mxu0
        %v879 = vadd.f32 %v269, %v878
        %v880 = vpop.f32.mrf.mxu0
        %881 = vmatprep.mubr.f32.mxu0 0.0
        %882 = vmatmul.mubr.f32.gmra.mxu0 %v536
        %v883 = vpop.f32.mrf.mxu0
        %v884 = vadd.f32 %v269, %v883
        %v885 = vpop.f32.mrf.mxu0
        %886 = vmatprep.mubr.f32.mxu0 0.0
        %887 = vmatmul.mubr.f32.gmra.mxu0 %v539
        %v888 = vpop.f32.mrf.mxu0
        %v889 = vadd.f32 %v269, %v888
        %v890 = vpop.f32.mrf.mxu0
        %891 = vmatprep.mubr.f32.mxu0 0.0
        %892 = vmatmul.mubr.f32.gmra.mxu0 %v542
        %v893 = vpop.f32.mrf.mxu0
        %v894 = vadd.f32 %v269, %v893
        %v895 = vpop.f32.mrf.mxu0
        %896 = vmatprep.mubr.f32.mxu0 0.0
        %897 = vmatmul.mubr.f32.gmra.mxu0 %v545
        %v898 = vpop.f32.mrf.mxu0
        %v899 = vadd.f32 %v269, %v898
        %v900 = vpop.f32.mrf.mxu0
        %901 = vmatprep.mubr.f32.mxu0 0.0
        %902 = vmatmul.mubr.f32.gmra.mxu0 %v548
        %v903 = vpop.f32.mrf.mxu0
        %v904 = vadd.f32 %v269, %v903
        %v905 = vpop.f32.mrf.mxu0
        %906 = vmatprep.mubr.f32.mxu0 0.0
        %907 = vmatmul.mubr.f32.gmra.mxu0 %v551
        %v908 = vpop.f32.mrf.mxu0
        %v909 = vadd.f32 %v269, %v908
        %v910 = vpop.f32.mrf.mxu0
        %911 = vmatprep.mubr.f32.mxu0 0.0
        %912 = vmatmul.mubr.f32.gmra.mxu0 %v554
        %v913 = vpop.f32.mrf.mxu0
        %v914 = vadd.f32 %v269, %v913
        %v915 = vpop.f32.mrf.mxu0
        %916 = vmatprep.mubr.f32.mxu0 0.0
        %917 = vmatmul.mubr.f32.gmra.mxu0 %v557
        %v918 = vpop.f32.mrf.mxu0
        %v919 = vadd.f32 %v269, %v918
        %v920 = vpop.f32.mrf.mxu0
        %921 = vmatprep.mubr.f32.mxu0 0.0
        %922 = vmatmul.mubr.f32.gmra.mxu0 %v560
        %v923 = vpop.f32.mrf.mxu0
        %v924 = vadd.f32 %v269, %v923
        %v925 = vpop.f32.mrf.mxu0
        %926 = vmatprep.mubr.f32.mxu0 0.0
        %927 = vmatmul.mubr.f32.gmra.mxu0 %v563
        %v928 = vpop.f32.mrf.mxu0
        %v929 = vadd.f32 %v269, %v928
        %v930 = vpop.f32.mrf.mxu0
        %931 = vmatprep.mubr.f32.mxu0 0.0
        %932 = vmatmul.mubr.f32.gmra.mxu0 %v566
        %v933 = vpop.f32.mrf.mxu0
        %v934 = vadd.f32 %v269, %v933
        %v935 = vpop.f32.mrf.mxu0
        %936 = vmatprep.mubr.f32.mxu0 0.0
        %937 = vmatmul.mubr.f32.gmra.mxu0 %v569
        %v938 = vpop.f32.mrf.mxu0
        %v939 = vadd.f32 %v269, %v938
        %v940 = vpop.f32.mrf.mxu0
        %941 = vmatprep.mubr.f32.mxu0 0.0
        %942 = vmatmul.mubr.f32.gmra.mxu0 %v572
        %v943 = vpop.f32.mrf.mxu0
        %v944 = vadd.f32 %v269, %v943
        %v945 = vpop.f32.mrf.mxu0
        %946 = vmatprep.mubr.f32.mxu0 0.0
        %947 = vmatmul.mubr.f32.gmra.mxu0 %v575
        %v948 = vpop.f32.mrf.mxu0
        %v949 = vadd.f32 %v269, %v948
        %v950 = vpop.f32.mrf.mxu0
        %951 = vmatprep.mubr.f32.mxu0 0.0
        %952 = vmatmul.mubr.f32.gmra.mxu0 %v578
        %v953 = vpop.f32.mrf.mxu0
        %v954 = vadd.f32 %v269, %v953
        %v955 = vpop.f32.mrf.mxu0
        %956 = vmatprep.mubr.f32.mxu0 0.0
        %957 = vmatmul.mubr.f32.gmra.mxu0 %v581
        %v958 = vpop.f32.mrf.mxu0
        %v959 = vadd.f32 %v269, %v958
        %v960 = vpop.f32.mrf.mxu0
        %961 = vmatprep.mubr.f32.mxu0 0.0
        %962 = vmatmul.mubr.f32.gmra.mxu0 %v584
        %v963 = vpop.f32.mrf.mxu0
        %v964 = vadd.f32 %v269, %v963
        %v965 = vpop.f32.mrf.mxu0
        %966 = vmatprep.mubr.f32.mxu0 0.0
        %967 = vmatmul.mubr.f32.gmra.mxu0 %v587
        %v968 = vpop.f32.mrf.mxu0
        %v969 = vadd.f32 %v269, %v968
        %v970 = vpop.f32.mrf.mxu0
        %971 = vmatprep.mubr.f32.mxu0 0.0
        %972 = vmatmul.mubr.f32.gmra.mxu0 %v590
        %v973 = vpop.f32.mrf.mxu0
        %v974 = vadd.f32 %v269, %v973
        %v975 = vpop.f32.mrf.mxu0
        %976 = vdwg.mxu0
        %977 = vst [vmem:[%s221] sm:$0xff] %v659
        %978 = vst [vmem:[%s221 + $0x8] sm:$0xff] %v664
        %979 = vst [vmem:[%s221 + $0x10] sm:$0xff] %v669
        %980 = vst [vmem:[%s221 + $0x18] sm:$0xff] %v674
        %981 = vst [vmem:[%s221 + $0x20] sm:$0xff] %v679
        %982 = vst [vmem:[%s221 + $0x28] sm:$0xff] %v684
        %983 = vst [vmem:[%s221 + $0x30] sm:$0xff] %v689
        %984 = vst [vmem:[%s221 + $0x38] sm:$0xff] %v694
        %985 = vst [vmem:[%s221 + $0x40] sm:$0xff] %v699
        %986 = vst [vmem:[%s221 + $0x48] sm:$0xff] %v704
        %987 = vst [vmem:[%s221 + $0x50] sm:$0xff] %v709
        %988 = vst [vmem:[%s221 + $0x58] sm:$0xff] %v714
        %989 = vst [vmem:[%s221 + $0x60] sm:$0xff] %v719
        %990 = vst [vmem:[%s221 + $0x68] sm:$0xff] %v724
        %991 = vst [vmem:[%s221 + $0x70] sm:$0xff] %v729
        %992 = vst [vmem:[%s221 + $0x78] sm:$0xff] %v734
        %993 = vst [vmem:[%s221 + $0x80] sm:$0xff] %v739
        %994 = vst [vmem:[%s221 + $0x88] sm:$0xff] %v744
        %995 = vst [vmem:[%s221 + $0x90] sm:$0xff] %v749
        %996 = vst [vmem:[%s221 + $0x98] sm:$0xff] %v754
        %997 = vst [vmem:[%s221 + $0xa0] sm:$0xff] %v759
        %998 = vst [vmem:[%s221 + $0xa8] sm:$0xff] %v764
        %999 = vst [vmem:[%s221 + $0xb0] sm:$0xff] %v769
        %1000 = vst [vmem:[%s221 + $0xb8] sm:$0xff] %v774
        %1001 = vst [vmem:[%s221 + $0xc0] sm:$0xff] %v779
        %1002 = vst [vmem:[%s221 + $0xc8] sm:$0xff] %v784
        %1003 = vst [vmem:[%s221 + $0xd0] sm:$0xff] %v789
        %1004 = vst [vmem:[%s221 + $0xd8] sm:$0xff] %v794
        %1005 = vst [vmem:[%s221 + $0xe0] sm:$0xff] %v799
        %1006 = vst [vmem:[%s221 + $0xe8] sm:$0xff] %v804
        %1007 = vst [vmem:[%s221 + $0xf0] sm:$0xff] %v809
        %1008 = vst [vmem:[%s221 + $0xf8] sm:$0xff] %v814
        %1009 = vst [vmem:[%s221 + $0x100] sm:$0xff] %v819
        %1010 = vst [vmem:[%s221 + $0x108] sm:$0xff] %v824
        %1011 = vst [vmem:[%s221 + $0x110] sm:$0xff] %v829
        %1012 = vst [vmem:[%s221 + $0x118] sm:$0xff] %v834
        %1013 = vst [vmem:[%s221 + $0x120] sm:$0xff] %v839
        %1014 = vst [vmem:[%s221 + $0x128] sm:$0xff] %v844
        %1015 = vst [vmem:[%s221 + $0x130] sm:$0xff] %v849
        %1016 = vst [vmem:[%s221 + $0x138] sm:$0xff] %v854
        %1017 = vst [vmem:[%s221 + $0x140] sm:$0xff] %v859
        %1018 = vst [vmem:[%s221 + $0x148] sm:$0xff] %v864
        %1019 = vst [vmem:[%s221 + $0x150] sm:$0xff] %v869
        %1020 = vst [vmem:[%s221 + $0x158] sm:$0xff] %v874
        %1021 = vst [vmem:[%s221 + $0x160] sm:$0xff] %v879
        %1022 = vst [vmem:[%s221 + $0x168] sm:$0xff] %v884
        %1023 = vst [vmem:[%s221 + $0x170] sm:$0xff] %v889
        %1024 = vst [vmem:[%s221 + $0x178] sm:$0xff] %v894
        %1025 = vst [vmem:[%s221 + $0x180] sm:$0xff] %v899
        %1026 = vst [vmem:[%s221 + $0x188] sm:$0xff] %v904
        %1027 = vst [vmem:[%s221 + $0x190] sm:$0xff] %v909
        %1028 = vst [vmem:[%s221 + $0x198] sm:$0xff] %v914
        %1029 = vst [vmem:[%s221 + $0x1a0] sm:$0xff] %v919
        %1030 = vst [vmem:[%s221 + $0x1a8] sm:$0xff] %v924
        %1031 = vst [vmem:[%s221 + $0x1b0] sm:$0xff] %v929
        %1032 = vst [vmem:[%s221 + $0x1b8] sm:$0xff] %v934
        %1033 = vst [vmem:[%s221 + $0x1c0] sm:$0xff] %v939
        %1034 = vst [vmem:[%s221 + $0x1c8] sm:$0xff] %v944
        %1035 = vst [vmem:[%s221 + $0x1d0] sm:$0xff] %v949
        %1036 = vst [vmem:[%s221 + $0x1d8] sm:$0xff] %v954
        %1037 = vst [vmem:[%s221 + $0x1e0] sm:$0xff] %v959
        %1038 = vst [vmem:[%s221 + $0x1e8] sm:$0xff] %v964
        %1039 = vst [vmem:[%s221 + $0x1f0] sm:$0xff] %v969
        %1040 = vst [vmem:[%s221 + $0x1f8] sm:$0xff] %v974
        %s1041 = sand.u32 %s113, 1
        %s1042 = scalar_lea.sflag [#allocation4], %s1041
        %s1043 = sand.u32 %s113, 1
        %s1044 = smul.addr %s1043, 512
        %s1045 = scalar_lea.vmem [#allocation7], %s1044
        // Predicated region
        $region41: #{tpu_custom_call.1} parent=31 // pred_check
          %p1046 = pneg %p123
        $region42: #{tpu_custom_call.1} parent=31 // pred_check_branch
          %1048 = sbr.rel (%p1046) target = $region44
        $region43: #{tpu_custom_call.1} parent=31 // pred_region
          %s1049 = smul.u32 64, %s26
          %s1051 = ssub.s32 8192, 8192
          %1052 = vsyncadd %s1042, %s1051
          %s1053 = smul.addr %s25, 128
          %s1054 = sadd.s32 %s1049, %s1053
          %s1055 = smul.addr %s1054, 128
          %s1056 = scalar_lea.hbm %s3, %s1055
          %s1057 = sshll.u32 %s1045, 4
          %s1058 = int_to_ptr.vmem [resolvable:$true] %s1057
          %1063 = dma.vmem_to_hbm [thread:$0]  %s1058, 8192, %s1056, %s1042, 128, 128, 8
        $region44: #{tpu_custom_call.1} parent=31 // pred_fallthru
          _
      $region32: #{tpu_custom_call.1} parent=5 // pred_fallthru
        _
      %p1064 = scmp.le.s32.totalorder 2, %s16
      // Predicated region
      $region45: #{tpu_custom_call.1} parent=5 // pred_check
        %p1065 = pneg %p1064
      $region46: #{tpu_custom_call.1} parent=5 // pred_check_branch
        %1067 = sbr.rel (%p1065) target = $region48
      $region47: #{tpu_custom_call.1} parent=5 // pred_region
        %s1068 = ssub.s32 %s16, 2
        // Predicated region
        $region49: #{tpu_custom_call.1} parent=47 // pred_check
          %p1069 = pneg %p129
        $region50: #{tpu_custom_call.1} parent=47 // pred_check_branch
          %1071 = sbr.rel (%p1069) target = $region52
        $region51: #{tpu_custom_call.1} parent=47 // pred_region
          %s1072 = sand.u32 %s114, 1
          %s1073 = scalar_lea.sflag [#allocation4], %s1072
          %s1074 = sand.u32 %s114, 1
          %s1075 = smul.addr %s1074, 512
          %s1076 = scalar_lea.vmem [#allocation7], %s1075
          %1077 = dma.done %s1073, 8192
        $region52: #{tpu_custom_call.1} parent=47 // pred_fallthru
          _
      $region48: #{tpu_custom_call.1} parent=5 // pred_fallthru
        _
    $region6: #{tpu_custom_call.1} parent=1 // loop_footer
      %s20 = sadd.s32 1, %s16
    $region7: #{tpu_custom_call.1} parent=1 // loop_footer_branch
      %15 = sbr.rel target = $region3
    $region8: #{tpu_custom_call.1} parent=1 // loop_exit
      _
    %1078 = vsyncpa [#allocation3], 1
    %s1079 = scalar_lea.sflag [#allocation3], 1
    %1080 = vsyncpa %s1079, 1
    %1081 = vsyncpa [#allocation6], 1
    %1082 = vsyncpa [#allocation4], 1
    %s1083 = scalar_lea.sflag [#allocation4], 1
    %1084 = vsyncpa %s1083, 1

</llo_original>
